<compile_context>
chip_gen: v7x
topology: tpu7x:2x2x1
jax: 0.10.0
libtpu: 0.0.40
codegen_flags: <defaults>
</compile_context>

<pallas_src>
import jax
import jax.numpy as jnp
import numpy as np
from jax.experimental import pallas as pl
from jax.experimental.pallas import tpu as pltpu

LANE = 128           # group-tile lane width; use 256 on v6e/v7x (2x256x256 MXU)


def _g_tile(C):
    assert LANE % C == 0, "demo assumes C divides 128; pad C at other sizes"
    return LANE // C


def prepare_params(adj, temporal_emb, spatial_emb, Ws, bs):
    """One-time parameter preprocessing (hoisted out of the jitted forward).

    Returns:
      adj_stack : (3, N, N)          f32   A_j = adj[N:2N, j*N:(j+1)*N]
      w_tile    : (Gt*C, 2K*Gt*C)    bf16  resident block-diagonal kron(I_Gt, W) tile
      bias_tile : (nit, N, 2K*Gt*C)  f32   Linear bias + aggregated-embedding contribution
    """
    T = temporal_emb.shape[1]
    N = spatial_emb.shape[2]
    K, _, C = Ws.shape
    gt = _g_tile(C)
    assert (T - 2) % gt == 0, "demo assumes (T-2) divisible by the group tile"
    nit = (T - 2) // gt

    adj_mid = adj[N:2 * N, :]                                     # (N, 3N)
    adj_stack = adj_mid.reshape(N, 3, N).transpose(1, 0, 2)       # (3, N, N)  f32

    # Fixed-size fused weight tile: block-diagonal over the Gt groups of ONE tile only.
    eye_gt = jnp.eye(gt, dtype=jnp.float32)
    blocks = []
    for half in range(2):                         # 0 = GLU lhs, 1 = GLU rhs (gate)
        for k in range(K):
            Whk = Ws[k, half * C:(half + 1) * C, :].T             # (C_in, C_out)
            blocks.append(jnp.kron(eye_gt, Whk))                  # (Gt*C, Gt*C)
    w_tile = jnp.concatenate(blocks, axis=1).astype(jnp.bfloat16)  # (Gt*C, 2K*Gt*C)

    # Absorb temporal+spatial embeddings into the bias (pre-GLU pipeline is affine in data).
    emb = temporal_emb[0, :, 0, :][:, None, :] + spatial_emb[0, 0][None, :, :]   # (T, N, C)
    agg_e = sum(jnp.einsum('nm,imc->inc', adj_stack[j], emb[j:j + (T - 2)])
                for j in range(3))                                # (T-2, N, C)
    Wsr = Ws.reshape(K, 2, C, C)                                  # [k, half, co, ci]
    eb = jnp.einsum('inc,khoc->inhko', agg_e, Wsr)                # (T-2, N, 2, K, C)
    fused = eb + bs.reshape(K, 2, C).transpose(1, 0, 2)[None, None]
    # pack to the kernel lane layout (half, k, g_local, co), one slab per window tile
    bias_tile = fused.reshape(nit, gt, N, 2, K, C)
    bias_tile = bias_tile.transpose(0, 2, 3, 4, 1, 5).reshape(nit, N, 2 * K * gt * C)
    return adj_stack, w_tile, bias_tile.astype(jnp.float32)


@jax.jit
def sts_sharing_layer(data, adj_stack, w_tile, bias_tile):
    """data:(B,T,N,C) + prepared params  ->  (B, T-2, N, C)"""
    B, T, N, C = data.shape
    gt = _g_tile(C)
    nit = (T - 2) // gt
    GTC = gt * C                        # = LANE (lane-dense tiles)
    KW = w_tile.shape[1]                # 2*K*Gt*C
    K = KW // (2 * GTC)

    # vertex-major per-batch slab: Y[b, n, t*C + c] = data[b, t, n, c]   (layout plumbing)
    Y = jnp.transpose(data, (0, 2, 1, 3)).reshape(B, N, T * C).astype(jnp.float32)

    def kernel(adj_ref, y_ref, w_ref, b_ref, out_ref):
        it = pl.program_id(1)
        # 128-aligned dynamic window covering this tile's gt+2 timesteps
        base = pl.multiple_of(it * GTC, GTC)
        ywin = y_ref[0, :, pl.ds(base, GTC + 2 * C)]              # (N, (gt+2)*C)  f32

        # graph aggregation as a sum of three block matmuls on lane slices (f32 MXU, f32 acc)
        h = jnp.dot(adj_ref[0], ywin[:, 0:GTC], preferred_element_type=jnp.float32)
        for j in range(1, 3):
            h = h + jnp.dot(adj_ref[j], ywin[:, j * C:j * C + GTC],
                            preferred_element_type=jnp.float32)   # (N, Gt*C)

        # all K branch Linears + both GLU halves: ONE bf16 matmul against the resident
        # block-diagonal tile (f32 accumulation), then the embedding-absorbed bias.
        y2 = jnp.dot(h.astype(jnp.bfloat16), w_ref[...],
                     preferred_element_type=jnp.float32) + b_ref[0]   # (N, 2K*Gt*C)

        # GLU on 128-aligned contiguous halves; K-max on 128-aligned slices.
        # f32 elementwise = v5e-safe; on v6e/v7x this section (and the output) can be bf16.
        lhs, rhs = y2[:, :K * GTC], y2[:, K * GTC:]
        glu = lhs * jax.nn.sigmoid(rhs)                           # (N, K*Gt*C)
        acc = glu[:, :GTC]
        for k in range(1, K):
            acc = jnp.maximum(acc, glu[:, k * GTC:(k + 1) * GTC])
        out_ref[0] = acc.astype(out_ref.dtype)                    # (N, Gt*C) lane-dense

    out = pl.pallas_call(
        kernel,
        out_shape=jax.ShapeDtypeStruct((B, N, (T - 2) * C), jnp.float32),
        grid=(B, nit),
        in_specs=[
            pl.BlockSpec((3, N, N), lambda b, it: (0, 0, 0)),       # resident adjacency
            pl.BlockSpec((1, N, T * C), lambda b, it: (b, 0, 0)),   # per-batch slab (reused over it)
            pl.BlockSpec(w_tile.shape, lambda b, it: (0, 0)),       # resident fused weight tile
            pl.BlockSpec((1, N, KW), lambda b, it: (it, 0, 0)),     # per-window-tile bias
        ],
        out_specs=pl.BlockSpec((1, N, GTC), lambda b, it: (b, 0, it)),
        compiler_params=pltpu.CompilerParams(
            dimension_semantics=("parallel", "parallel")),
    )(adj_stack, Y, w_tile, bias_tile)

    # lane-dense (B, N, (T-2)*C) -> (B, T-2, N, C)   (pure layout plumbing)
    return jnp.transpose(out.reshape(B, N, T - 2, C), (0, 2, 1, 3))


def reference(data, adj, temporal_emb, spatial_emb, Ws, bs):
    """Pure-JAX (f32) transliteration of the PyTorch forward (GLU path) for checking."""
    B, T, N, C = data.shape
    K = Ws.shape[0]
    x = data + temporal_emb + spatial_emb
    need = []
    for i in range(T - 2):
        t = x[:, i:i + 3].reshape(-1, 3 * N, C)      # (B, 3N, C)
        need.append(jnp.swapaxes(t, 0, 1))           # (3N, B, C)
    t = jnp.concatenate(need, axis=1)                # (3N, (T-2)*B, C)
    results = []
    for k in range(K):
        d = jnp.swapaxes(t, 0, 1)                    # (B', 3N, C)
        d = jnp.einsum('ij,bjc->bic', adj, d)        # bmm(adj, data)
        d = jnp.swapaxes(d, 0, 1)                    # (3N, B', C)
        y = d @ Ws[k].T + bs[k]                      # (3N, B', 2C)
        r = y[..., :C] * jax.nn.sigmoid(y[..., C:])  # GLU
        results.append(r[N:2 * N][None])             # mid-step
    maxv = jnp.max(jnp.concatenate(results, axis=0), axis=0)   # (N, B', C)
    out = maxv.reshape(N, T - 2, -1, C)
    return jnp.swapaxes(out, 0, 2)                   # (B, T-2, N, C)


if __name__ == "__main__":
    # (T-2)=16 with C=16 -> Gtile=8 -> 2 window tiles/batch -> grid (B, 2) = (2, 2)
    B, T, N, C = 2, 18, 8, 16
    K = 3  # len(filters); inside StsGcm every Gcn uses filter_features = C

    key = jax.random.PRNGKey(0)
    k1, k2, k3, k4, k5, k6 = jax.random.split(key, 6)

    data = jax.random.normal(k1, (B, T, N, C), jnp.float32)
    adj = jax.random.normal(k2, (3 * N, 3 * N), jnp.float32) * 0.1
    temporal_emb = jax.random.normal(k3, (1, T, 1, C), jnp.float32) * 0.1
    spatial_emb = jax.random.normal(k4, (1, 1, N, C), jnp.float32) * 0.1
    Ws = jax.random.normal(k5, (K, 2 * C, C), jnp.float32) * (1.0 / np.sqrt(C))
    bs = jax.random.normal(k6, (K, 2 * C), jnp.float32) * 0.01

    # one-time parameter prep (hoisted out of the jitted forward)
    params = prepare_params(adj, temporal_emb, spatial_emb, Ws, bs)

    out = jax.block_until_ready(sts_sharing_layer(data, *params))
    ref = jax.block_until_ready(reference(data, adj, temporal_emb, spatial_emb, Ws, bs))

    assert out.shape == (B, T - 2, N, C), out.shape
    # only the fused-Linear matmul runs in bf16 (f32 accumulation) -> tight-ish tolerance
    np.testing.assert_allclose(np.asarray(out), np.asarray(ref), rtol=2e-2, atol=2e-2)

    print("KERNEL_OK")
</pallas_src>

<mosaic_0001>
module attributes {stable_mosaic.version = 11 : i64} {
  func.func @kernel(%arg0: i32, %arg1: i32, %arg2: memref<3x8x8xf32, #tpu.memory_space<vmem>>, %arg3: memref<1x8x288xf32, #tpu.memory_space<vmem>>, %arg4: memref<128x768xbf16, #tpu.memory_space<vmem>>, %arg5: memref<1x8x768xf32, #tpu.memory_space<vmem>>, %arg6: memref<1x8x128xf32, #tpu.memory_space<vmem>>) attributes {dimension_semantics = [#tpu.dimension_semantics<parallel>, #tpu.dimension_semantics<parallel>], iteration_bounds = array<i64: 2, 2>, scalar_prefetch = 0 : i64, scratch_operands = 0 : i64, tpu.core_type = #tpu.core_type<tc>, window_params = [{pipeline_mode = #tpu.pipeline_mode<synchronous>, transform_indices = @transform_0, window_bounds = array<i64: 3, 8, 8>}, {transform_indices = @transform_1, window_bounds = array<i64: 1, 8, 288>}, {pipeline_mode = #tpu.pipeline_mode<synchronous>, transform_indices = @transform_2, window_bounds = array<i64: 128, 768>}, {transform_indices = @transform_3, window_bounds = array<i64: 1, 8, 768>}, {transform_indices = @transform_4, window_bounds = array<i64: 1, 8, 128>}]} {
    %c128_i32 = arith.constant 128 : i32
    %0 = arith.muli %arg1, %c128_i32 : i32
    %1 = tpu.assume_multiple %0, 128 : i32
    %c0 = arith.constant 0 : index
    %c0_0 = arith.constant 0 : index
    %2 = arith.index_cast %1 : i32 to index
    %3 = vector.load %arg3[%c0, %c0_0, %2] : memref<1x8x288xf32, #tpu.memory_space<vmem>>, vector<1x8x160xf32>
    %4 = vector.shape_cast %3 : vector<1x8x160xf32> to vector<8x160xf32>
    %c0_1 = arith.constant 0 : index
    %c0_2 = arith.constant 0 : index
    %c0_3 = arith.constant 0 : index
    %5 = vector.load %arg2[%c0_1, %c0_2, %c0_3] : memref<3x8x8xf32, #tpu.memory_space<vmem>>, vector<1x8x8xf32>
    %6 = vector.shape_cast %5 : vector<1x8x8xf32> to vector<8x8xf32>
    %7 = vector.extract_strided_slice %4 {offsets = [0, 0], sizes = [8, 128], strides = [1, 1]} : vector<8x160xf32> to vector<8x128xf32>
    %cst = arith.constant dense<0.000000e+00> : vector<8x128xf32>
    %8 = tpu.matmul %6, %7, %cst {dimension_numbers = #tpu.dot_dimension_numbers<[1], [0], [0], [1], [0, 0, 1, 1], [], []>} : vector<8x8xf32>, vector<8x128xf32>, vector<8x128xf32> -> vector<8x128xf32>
    %c1 = arith.constant 1 : index
    %c0_4 = arith.constant 0 : index
    %c0_5 = arith.constant 0 : index
    %9 = vector.load %arg2[%c1, %c0_4, %c0_5] : memref<3x8x8xf32, #tpu.memory_space<vmem>>, vector<1x8x8xf32>
    %10 = vector.shape_cast %9 : vector<1x8x8xf32> to vector<8x8xf32>
    %11 = vector.extract_strided_slice %4 {offsets = [0, 16], sizes = [8, 128], strides = [1, 1]} : vector<8x160xf32> to vector<8x128xf32>
    %cst_6 = arith.constant dense<0.000000e+00> : vector<8x128xf32>
    %12 = tpu.matmul %10, %11, %cst_6 {dimension_numbers = #tpu.dot_dimension_numbers<[1], [0], [0], [1], [0, 0, 1, 1], [], []>} : vector<8x8xf32>, vector<8x128xf32>, vector<8x128xf32> -> vector<8x128xf32>
    %13 = arith.addf %8, %12 : vector<8x128xf32>
    %c2 = arith.constant 2 : index
    %c0_7 = arith.constant 0 : index
    %c0_8 = arith.constant 0 : index
    %14 = vector.load %arg2[%c2, %c0_7, %c0_8] : memref<3x8x8xf32, #tpu.memory_space<vmem>>, vector<1x8x8xf32>
    %15 = vector.shape_cast %14 : vector<1x8x8xf32> to vector<8x8xf32>
    %16 = vector.extract_strided_slice %4 {offsets = [0, 32], sizes = [8, 128], strides = [1, 1]} : vector<8x160xf32> to vector<8x128xf32>
    %cst_9 = arith.constant dense<0.000000e+00> : vector<8x128xf32>
    %17 = tpu.matmul %15, %16, %cst_9 {dimension_numbers = #tpu.dot_dimension_numbers<[1], [0], [0], [1], [0, 0, 1, 1], [], []>} : vector<8x8xf32>, vector<8x128xf32>, vector<8x128xf32> -> vector<8x128xf32>
    %18 = arith.addf %13, %17 : vector<8x128xf32>
    %19 = arith.truncf %18 : vector<8x128xf32> to vector<8x128xbf16>
    %c0_10 = arith.constant 0 : index
    %c0_11 = arith.constant 0 : index
    %20 = vector.load %arg4[%c0_10, %c0_11] : memref<128x768xbf16, #tpu.memory_space<vmem>>, vector<128x768xbf16>
    %cst_12 = arith.constant dense<0.000000e+00> : vector<8x768xf32>
    %21 = tpu.matmul %19, %20, %cst_12 {dimension_numbers = #tpu.dot_dimension_numbers<[1], [0], [0], [1], [0, 0, 1, 1], [], []>} : vector<8x128xbf16>, vector<128x768xbf16>, vector<8x768xf32> -> vector<8x768xf32>
    %c0_13 = arith.constant 0 : index
    %c0_14 = arith.constant 0 : index
    %c0_15 = arith.constant 0 : index
    %22 = vector.load %arg5[%c0_13, %c0_14, %c0_15] : memref<1x8x768xf32, #tpu.memory_space<vmem>>, vector<1x8x768xf32>
    %23 = vector.shape_cast %22 : vector<1x8x768xf32> to vector<8x768xf32>
    %24 = arith.addf %21, %23 : vector<8x768xf32>
    %25 = vector.extract_strided_slice %24 {offsets = [0, 0], sizes = [8, 384], strides = [1, 1]} : vector<8x768xf32> to vector<8x384xf32>
    %26 = vector.extract_strided_slice %24 {offsets = [0, 384], sizes = [8, 384], strides = [1, 1]} : vector<8x768xf32> to vector<8x384xf32>
    %27 = arith.negf %26 : vector<8x384xf32>
    %28 = math.exp %27 : vector<8x384xf32>
    %cst_16 = arith.constant 1.000000e+00 : f32
    %29 = vector.broadcast %cst_16 : f32 to vector<8x384xf32>
    %30 = arith.addf %29, %28 : vector<8x384xf32>
    %31 = arith.divf %29, %30 : vector<8x384xf32>
    %32 = arith.mulf %25, %31 : vector<8x384xf32>
    %33 = vector.extract_strided_slice %32 {offsets = [0, 0], sizes = [8, 128], strides = [1, 1]} : vector<8x384xf32> to vector<8x128xf32>
    %34 = vector.extract_strided_slice %32 {offsets = [0, 128], sizes = [8, 128], strides = [1, 1]} : vector<8x384xf32> to vector<8x128xf32>
    %35 = arith.maximumf %33, %34 : vector<8x128xf32>
    %36 = vector.extract_strided_slice %32 {offsets = [0, 256], sizes = [8, 128], strides = [1, 1]} : vector<8x384xf32> to vector<8x128xf32>
    %37 = arith.maximumf %35, %36 : vector<8x128xf32>
    %c0_17 = arith.constant 0 : index
    %c0_18 = arith.constant 0 : index
    %c0_19 = arith.constant 0 : index
    %38 = vector.load %arg6[%c0_17, %c0_18, %c0_19] : memref<1x8x128xf32, #tpu.memory_space<vmem>>, vector<1x8x128xf32>
    %39 = vector.shape_cast %38 : vector<1x8x128xf32> to vector<8x128xf32>
    %40 = vector.shape_cast %37 : vector<8x128xf32> to vector<1x8x128xf32>
    tpu.vector_store %arg6[%c0_17, %c0_18, %c0_19], %40 {strides = array<i32>} : memref<1x8x128xf32, #tpu.memory_space<vmem>>, vector<1x8x128xf32>,
    return
  }
  func.func @transform_0(%arg0: i32, %arg1: i32) -> (i32, i32, i32) {
    %c0_i32 = arith.constant 0 : i32
    %c0_i32_0 = arith.constant 0 : i32
    %c0_i32_1 = arith.constant 0 : i32
    %c0_i32_2 = arith.constant 0 : i32
    return %c0_i32, %c0_i32_0, %c0_i32_1 : i32, i32, i32
  }
  func.func @transform_1(%arg0: i32, %arg1: i32) -> (i32, i32, i32) {
    %c0_i32 = arith.constant 0 : i32
    %c0_i32_0 = arith.constant 0 : i32
    %c0_i32_1 = arith.constant 0 : i32
    return %arg0, %c0_i32, %c0_i32_0 : i32, i32, i32
  }
  func.func @transform_2(%arg0: i32, %arg1: i32) -> (i32, i32) {
    %c0_i32 = arith.constant 0 : i32
    %c0_i32_0 = arith.constant 0 : i32
    %c0_i32_1 = arith.constant 0 : i32
    return %c0_i32, %c0_i32_0 : i32, i32
  }
  func.func @transform_3(%arg0: i32, %arg1: i32) -> (i32, i32, i32) {
    %c0_i32 = arith.constant 0 : i32
    %c0_i32_0 = arith.constant 0 : i32
    %c0_i32_1 = arith.constant 0 : i32
    return %arg1, %c0_i32, %c0_i32_0 : i32, i32, i32
  }
  func.func @transform_4(%arg0: i32, %arg1: i32) -> (i32, i32, i32) {
    %c0_i32 = arith.constant 0 : i32
    %c0_i32_0 = arith.constant 0 : i32
    return %arg0, %c0_i32, %arg1 : i32, i32, i32
  }
}

</mosaic_0001>

<llo_original>
// kernel: sts_sharing_layer.1
$region0: #{sts_sharing_layer.1}
  #allocation0 [shape = 'u32[]', space=smem, size = 0x4, offset = 0x4, fixed_abs, tag = 'smem constant byte address 0x4 - core index']
  #allocation1 [shape = 'u32[144,128]{1,0:T(1,128)}', space=vmem, size = 0x12000, scoped, tag = 'internal scratch']
  %s0 = inlined_call_operand.vmem [shape: f32[3,8,8], index: 0, kind: input, shape index: {}]
  %s1 = inlined_call_operand.vmem [shape: f32[2,8,288], index: 1, kind: input, shape index: {}]
  %s2 = inlined_call_operand.vmem [shape: bf16[128,768], index: 2, kind: input, shape index: {}]
  %s3 = inlined_call_operand.vmem [shape: f32[2,8,768], index: 3, kind: input, shape index: {}]
  %s4 = inlined_call_operand.vmem [shape: f32[2,8,256], index: 4, kind: output, shape index: {}]
  %s5 = sld [smem:[#allocation0]]
  $region49: #{sts_sharing_layer.1} parent=0
    _
  %s7 = ssub.s32 1, %s5
  %s8 = scalar_select 0, %s7, %s5
  loop: start=0, step=1, limit=6
  $region2: #{sts_sharing_layer.1} parent=0 // loop_pre_header
    _
  $region3: #{sts_sharing_layer.1} parent=0 // loop_header
    %s10 = sphi 0, %s14
    %p11 = scmp.ge.s32.totalorder %s10, 6
    %s17 = sphi 0, %s29
    %s18 = sphi 0, %s25
    %s19 = sphi 0, %s17
    %s20 = sphi 0, %s18
    %s21 = sphi 0, %s19
    %s22 = sphi 0, %s20
    %s30 = sphi 0, %s30
    %s32 = sphi 0, %s30
    %s33 = sphi 0, %s32
    %s47 = sphi 0, %s33
    %s53 = sphi 0, %s55
    %s56 = sphi 0, %s53
    %s57 = sphi 0, %s56
    %s73 = sphi 0, %s57
    %s77 = sphi 0, %s77
    %s79 = sphi 0, %s77
    %s80 = sphi 0, %s79
    %s94 = sphi 0, %s80
    %s100 = sphi 0, %s102
    %s103 = sphi 0, %s100
    %s104 = sphi 0, %s103
    %s120 = sphi 0, %s104
    %s128 = sphi 0, %s130
    %s131 = sphi 0, %s128
    %s132 = sphi 0, %s131
    %s148 = sphi 0, %s132
  $region4: #{sts_sharing_layer.1} parent=0 // loop_header_branch
    %13 = sbr.rel (%p11) target = $region8
  $region5: #{sts_sharing_layer.1} parent=0 // loop_body
    %s15 = ssub.s32 %s10, 1
    %s16 = ssub.s32 %s10, 2
    %s23 = sadd.s32 1, %s18
    %p24 = scmp.ge.s32.totalorder %s23, 2
    %s25 = scalar_select %p24, 0, %s23
    %s26 = sadd.s32 1, %s17
    %s27 = scalar_select %p24, %s26, %s17
    %p28 = scmp.ge.s32.totalorder %s27, 2
    %s29 = scalar_select %p28, 0, %s27
    %s31 = sadd.s32 %s30, 1
    %p34 = scmp.eq.s32.totalorder %s10, 3
    %p35 = scmp.ne.s32.totalorder %s30, %s32
    %p36 = scmp.eq.s32.totalorder %s10, 0
    %p37 = por %p35, %p36
    %p38 = scmp.ne.s32.totalorder %s30, %s32
    %p39 = scmp.eq.s32.totalorder %s15, 3
    %p40 = por %p38, %p39
    %p41 = scmp.ne.s32.totalorder %s32, %s33
    %p42 = scmp.eq.s32.totalorder %s15, 0
    %p43 = por %p41, %p42
    %p44 = scmp.ne.s32.totalorder %s32, %s33
    %p45 = scmp.eq.s32.totalorder %s16, 3
    %p46 = por %p44, %p45
    %p48 = scmp.ne.s32.totalorder %s33, %s47
    %p49 = scmp.eq.s32.totalorder %s16, 0
    %p50 = por %p48, %p49
    %s51 = ssub.s32 %s17, %s29
    %p52 = scmp.eq.s32.totalorder %s51, 0
    %s54 = sadd.s32 %s53, 1
    %s55 = scalar_select %p52, %s53, %s54
    %p58 = pneg %p52
    %p59 = scmp.eq.s32.totalorder %s10, 3
    %p60 = por %p58, %p59
    %p61 = scmp.ne.s32.totalorder %s53, %s56
    %p62 = scmp.eq.s32.totalorder %s10, 0
    %p63 = por %p61, %p62
    %p64 = scmp.ne.s32.totalorder %s53, %s56
    %p65 = scmp.eq.s32.totalorder %s15, 3
    %p66 = por %p64, %p65
    %p67 = scmp.ne.s32.totalorder %s56, %s57
    %p68 = scmp.eq.s32.totalorder %s15, 0
    %p69 = por %p67, %p68
    %p70 = scmp.ne.s32.totalorder %s56, %s57
    %p71 = scmp.eq.s32.totalorder %s16, 3
    %p72 = por %p70, %p71
    %p74 = scmp.ne.s32.totalorder %s57, %s73
    %p75 = scmp.eq.s32.totalorder %s16, 0
    %p76 = por %p74, %p75
    %s78 = sadd.s32 %s77, 1
    %p81 = scmp.eq.s32.totalorder %s10, 3
    %p82 = scmp.ne.s32.totalorder %s77, %s79
    %p83 = scmp.eq.s32.totalorder %s10, 0
    %p84 = por %p82, %p83
    %p85 = scmp.ne.s32.totalorder %s77, %s79
    %p86 = scmp.eq.s32.totalorder %s15, 3
    %p87 = por %p85, %p86
    %p88 = scmp.ne.s32.totalorder %s79, %s80
    %p89 = scmp.eq.s32.totalorder %s15, 0
    %p90 = por %p88, %p89
    %p91 = scmp.ne.s32.totalorder %s79, %s80
    %p92 = scmp.eq.s32.totalorder %s16, 3
    %p93 = por %p91, %p92
    %p95 = scmp.ne.s32.totalorder %s80, %s94
    %p96 = scmp.eq.s32.totalorder %s16, 0
    %p97 = por %p95, %p96
    %s98 = ssub.s32 %s18, %s25
    %p99 = scmp.eq.s32.totalorder %s98, 0
    %s101 = sadd.s32 %s100, 1
    %s102 = scalar_select %p99, %s100, %s101
    %p105 = pneg %p99
    %p106 = scmp.eq.s32.totalorder %s10, 3
    %p107 = por %p105, %p106
    %p108 = scmp.ne.s32.totalorder %s100, %s103
    %p109 = scmp.eq.s32.totalorder %s10, 0
    %p110 = por %p108, %p109
    %p111 = scmp.ne.s32.totalorder %s100, %s103
    %p112 = scmp.eq.s32.totalorder %s15, 3
    %p113 = por %p111, %p112
    %p114 = scmp.ne.s32.totalorder %s103, %s104
    %p115 = scmp.eq.s32.totalorder %s15, 0
    %p116 = por %p114, %p115
    %p117 = scmp.ne.s32.totalorder %s103, %s104
    %p118 = scmp.eq.s32.totalorder %s16, 3
    %p119 = por %p117, %p118
    %p121 = scmp.ne.s32.totalorder %s104, %s120
    %p122 = scmp.eq.s32.totalorder %s16, 0
    %p123 = por %p121, %p122
    %s124 = ssub.s32 %s17, %s29
    %s125 = ssub.s32 %s18, %s25
    %s126 = sor.u32 %s124, %s125
    %p127 = scmp.eq.s32.totalorder %s126, 0
    %s129 = sadd.s32 %s128, 1
    %s130 = scalar_select %p127, %s128, %s129
    %p133 = pneg %p127
    %p134 = scmp.eq.s32.totalorder %s10, 3
    %p135 = por %p133, %p134
    %p136 = scmp.ne.s32.totalorder %s128, %s131
    %p137 = scmp.eq.s32.totalorder %s10, 0
    %p138 = por %p136, %p137
    %p139 = scmp.ne.s32.totalorder %s128, %s131
    %p140 = scmp.eq.s32.totalorder %s15, 3
    %p141 = por %p139, %p140
    %p142 = scmp.ne.s32.totalorder %s131, %s132
    %p143 = scmp.eq.s32.totalorder %s15, 0
    %p144 = por %p142, %p143
    %p145 = scmp.ne.s32.totalorder %s131, %s132
    %p146 = scmp.eq.s32.totalorder %s16, 3
    %p147 = por %p145, %p146
    %p149 = scmp.ne.s32.totalorder %s132, %s148
    %p150 = scmp.eq.s32.totalorder %s16, 0
    %p151 = por %p149, %p150
    %p152 = scmp.le.s32.totalorder 1, %s10
    %p153 = scmp.lt.s32.totalorder %s10, 5
    %p154 = pnand %p152, %p153
    %p155 = pneg %p154
    // Predicated region
    $region9: #{sts_sharing_layer.1} parent=5 // pred_check
      _
    $region10: #{sts_sharing_layer.1} parent=5 // pred_check_branch
      %157 = sbr.rel (%p154) target = $region12
    $region11: #{sts_sharing_layer.1} parent=5 // pred_region
      %s158 = ssub.s32 %s10, 1
      // Predicated region
      $region13: #{sts_sharing_layer.1} parent=11 // pred_check
        %p159 = pneg %p43
      $region14: #{sts_sharing_layer.1} parent=11 // pred_check_branch
        %161 = sbr.rel (%p159) target = $region16
      $region15: #{sts_sharing_layer.1} parent=11 // pred_region
        _
      $region16: #{sts_sharing_layer.1} parent=11 // pred_fallthru
        _
      // Predicated region
      $region17: #{sts_sharing_layer.1} parent=11 // pred_check
        %p162 = pneg %p90
      $region18: #{sts_sharing_layer.1} parent=11 // pred_check_branch
        %164 = sbr.rel (%p162) target = $region20
      $region19: #{sts_sharing_layer.1} parent=11 // pred_region
        _
      $region20: #{sts_sharing_layer.1} parent=11 // pred_fallthru
        _
    $region12: #{sts_sharing_layer.1} parent=5 // pred_fallthru
      _
    %p165 = scmp.lt.s32.totalorder %s10, 4
    // Predicated region
    $region21: #{sts_sharing_layer.1} parent=5 // pred_check
      %p166 = pneg %p165
    $region22: #{sts_sharing_layer.1} parent=5 // pred_check_branch
      %168 = sbr.rel (%p166) target = $region24
    $region23: #{sts_sharing_layer.1} parent=5 // pred_region
      // Predicated region
      $region25: #{sts_sharing_layer.1} parent=23 // pred_check
        %p169 = pneg %p63
      $region26: #{sts_sharing_layer.1} parent=23 // pred_check_branch
        %171 = sbr.rel (%p169) target = $region28
      $region27: #{sts_sharing_layer.1} parent=23 // pred_region
        %p172 = scmp.lt.s32.totalorder %s17, 1
        %s173 = scalar_select %p172, %s17, 1
        %s174 = smul.addr %s173, 3
        %s175 = smul.addr %s174, 8
        %s176 = scalar_lea.vmem %s1, %s175
      $region28: #{sts_sharing_layer.1} parent=23 // pred_fallthru
        _
      // Predicated region
      $region29: #{sts_sharing_layer.1} parent=23 // pred_check
        %p177 = pneg %p110
      $region30: #{sts_sharing_layer.1} parent=23 // pred_check_branch
        %179 = sbr.rel (%p177) target = $region32
      $region31: #{sts_sharing_layer.1} parent=23 // pred_region
        %p180 = scmp.lt.s32.totalorder %s18, 1
        %s181 = scalar_select %p180, %s18, 1
        %s182 = smul.addr %s181, 6
        %s183 = smul.addr %s182, 8
        %s184 = scalar_lea.vmem %s3, %s183
      $region32: #{sts_sharing_layer.1} parent=23 // pred_fallthru
        _
    $region24: #{sts_sharing_layer.1} parent=5 // pred_fallthru
      _
    %p185 = scmp.le.s32.totalorder 1, %s10
    %p186 = scmp.lt.s32.totalorder %s10, 5
    %p187 = pnand %p185, %p186
    %p188 = pneg %p187
    // Predicated region
    $region33: #{sts_sharing_layer.1} parent=5 // pred_check
      _
    $region34: #{sts_sharing_layer.1} parent=5 // pred_check_branch
      %190 = sbr.rel (%p187) target = $region36
    $region35: #{sts_sharing_layer.1} parent=5 // pred_region
      %s191 = ssub.s32 %s10, 1
      %p192 = pneg %p43
      %p193 = pneg %p40
      %p194 = scmp.lt.s32.totalorder %s19, 1
      %s195 = scalar_select %p194, %s19, 1
      %s196 = smul.addr %s195, 3
      %s197 = smul.addr %s196, 8
      %s198 = scalar_lea.vmem %s1, %s197
      %p199 = pneg %p69
      %p200 = pneg %p66
      %p201 = pneg %p90
      %p202 = pneg %p87
      %p203 = scmp.lt.s32.totalorder %s20, 1
      %s204 = scalar_select %p203, %s20, 1
      %s205 = smul.addr %s204, 6
      %s206 = smul.addr %s205, 8
      %s207 = scalar_lea.vmem %s3, %s206
      %p208 = pneg %p116
      %p209 = pneg %p113
      %p210 = pneg %p144
      %p211 = pneg %p141
      %p212 = scmp.lt.s32.totalorder %s19, 1
      %s213 = scalar_select %p212, %s19, 1
      %p214 = scmp.lt.s32.totalorder %s20, 1
      %s215 = scalar_select %p214, %s20, 1
      %s216 = smul.addr %s213, 2
      %s217 = sadd.s32 %s215, %s216
      %s218 = smul.addr %s217, 8
      %s219 = scalar_lea.vmem %s4, %s218
      %p220 = scmp.lt.s32.totalorder %s19, 1
      %s221 = scalar_select %p220, %s19, 1
      %s222 = smul.addr %s221, 3
      %s223 = smul.addr %s222, 8
      %s224 = scalar_lea.vmem %s1, %s223
      %p225 = scmp.lt.s32.totalorder %s20, 1
      %s226 = scalar_select %p225, %s20, 1
      %s227 = smul.addr %s226, 6
      %s228 = smul.addr %s227, 8
      %s229 = scalar_lea.vmem %s3, %s228
      %p230 = scmp.lt.s32.totalorder %s19, 1
      %s231 = scalar_select %p230, %s19, 1
      %p232 = scmp.lt.s32.totalorder %s20, 1
      %s233 = scalar_select %p232, %s20, 1
      %s234 = smul.addr %s231, 2
      %s235 = sadd.s32 %s233, %s234
      %s236 = smul.addr %s235, 8
      %s237 = scalar_lea.vmem %s4, %s236
      %s239 = smul.u32 %s20, 128
      %s240 = sshra.s32 %s239, 7
      %s241 = sand.u32 %s239, 127
      %s242 = smul.addr %s240, 8
      %s243 = scalar_lea.vmem %s224, %s242
      %v244 = vld [vmem:[%s243] sm:$0xff]
      %v245 = vld [vmem:[%s243 + $0x8] sm:$0xff]
      %v246 = vld [vmem:[%s0] sm:$0xff]
      %s247 = scalar_lea.vmem %s0, 8
      %v248 = vld [vmem:[%s247] sm:$0xff]
      %251 = vrot.lane.b32.xlu0 %v244, 112
      %v252 = vpop.permute.xlu0 %251
      %253 = vrot.lane.b32.xlu0 %v245, 112
      %v254 = vpop.permute.xlu0 %253
      %vm255 = vcmask 916480
      %v256 = vsel %vm255, %v252, %v254
      %vm258 = vcmask 64512
      %v260 = vsel %vm258, %v248, 0
      %262 = vmatprep.subr.mxu0 0.0
      %263 = vmatpush1.msra.mxu0 %v256
      %264 = vmatprep.subr.mxu0 0.0
      %265 = vmatpush1.msra.mxu0 0.0
      %266 = vmatprep.subr.mxu0 0.0
      %267 = vmatpush1.msra.mxu0 0.0
      %268 = vmatprep.subr.mxu0 0.0
      %269 = vmatpush1.msra.mxu0 0.0
      %270 = vmatprep.subr.mxu0 0.0
      %271 = vmatpush1.msra.mxu0 0.0
      %272 = vmatprep.subr.mxu0 0.0
      %273 = vmatpush1.msra.mxu0 0.0
      %274 = vmatprep.subr.mxu0 0.0
      %275 = vmatpush1.msra.mxu0 0.0
      %276 = vmatprep.subr.mxu0 0.0
      %277 = vmatpush1.msra.mxu0 0.0
      %278 = vmatprep.subr.mxu0 0.0
      %279 = vmatpush1.msra.mxu0 0.0
      %280 = vmatprep.subr.mxu0 0.0
      %281 = vmatpush1.msra.mxu0 0.0
      %282 = vmatprep.subr.mxu0 0.0
      %283 = vmatpush1.msra.mxu0 0.0
      %284 = vmatprep.subr.mxu0 0.0
      %285 = vmatpush1.msra.mxu0 0.0
      %286 = vmatprep.subr.mxu0 0.0
      %287 = vmatpush1.msra.mxu0 0.0
      %288 = vmatprep.subr.mxu0 0.0
      %289 = vmatpush1.msra.mxu0 0.0
      %290 = vmatprep.subr.mxu0 0.0
      %291 = vmatpush1.msra.mxu0 0.0
      %292 = vmatprep.subr.mxu0 0.0
      %293 = vmatpush1.msra.mxu0 0.0
      %294 = vmatprep.subr.mxu0 0.0
      %295 = vmatpush1.msra.mxu0 0.0
      %296 = vmatprep.subr.mxu0 0.0
      %297 = vmatpush1.msra.mxu0 0.0
      %298 = vmatprep.subr.mxu0 0.0
      %299 = vmatpush1.msra.mxu0 0.0
      %300 = vmatprep.subr.mxu0 0.0
      %301 = vmatpush1.msra.mxu0 0.0
      %302 = vmatprep.subr.mxu0 0.0
      %303 = vmatpush1.msra.mxu0 0.0
      %304 = vmatprep.subr.mxu0 0.0
      %305 = vmatpush1.msra.mxu0 0.0
      %306 = vmatprep.subr.mxu0 0.0
      %307 = vmatpush1.msra.mxu0 0.0
      %308 = vmatprep.subr.mxu0 0.0
      %309 = vmatpush1.msra.mxu0 0.0
      %310 = vmatprep.subr.mxu0 0.0
      %311 = vmatpush1.msra.mxu0 0.0
      %312 = vmatprep.subr.mxu0 0.0
      %313 = vmatpush1.msra.mxu0 0.0
      %314 = vmatprep.subr.mxu0 0.0
      %315 = vmatpush1.msra.mxu0 0.0
      %316 = vmatprep.subr.mxu0 0.0
      %317 = vmatpush1.msra.mxu0 0.0
      %318 = vmatprep.subr.mxu0 0.0
      %319 = vmatpush1.msra.mxu0 0.0
      %320 = vmatprep.subr.mxu0 0.0
      %321 = vmatpush1.msra.mxu0 0.0
      %322 = vmatprep.subr.mxu0 0.0
      %323 = vmatpush1.msra.mxu0 0.0
      %324 = vmatprep.subr.mxu0 0.0
      %325 = vmatpush1.msra.mxu0 0.0
      %326 = vmatprep.mubr.f32.mxu0 0.0
      %327 = vmatmul.mubr.f32.gmra.mrb[0].mxu0 %v260
      %v328 = vpop.f32.mrb[0].mxu0
      %v329 = vadd.f32 0.0, %v328
      %v330 = vpop.f32.mrb[0].mxu0
      %331 = vdwg.mxu0
      %v333 = vsel %vm258, %v246, 0
      %335 = vmatprep.subr.mxu0 0.0
      %336 = vmatpush1.msra.mxu0 %v244
      %337 = vmatprep.subr.mxu0 0.0
      %338 = vmatpush1.msra.mxu0 0.0
      %339 = vmatprep.subr.mxu0 0.0
      %340 = vmatpush1.msra.mxu0 0.0
      %341 = vmatprep.subr.mxu0 0.0
      %342 = vmatpush1.msra.mxu0 0.0
      %343 = vmatprep.subr.mxu0 0.0
      %344 = vmatpush1.msra.mxu0 0.0
      %345 = vmatprep.subr.mxu0 0.0
      %346 = vmatpush1.msra.mxu0 0.0
      %347 = vmatprep.subr.mxu0 0.0
      %348 = vmatpush1.msra.mxu0 0.0
      %349 = vmatprep.subr.mxu0 0.0
      %350 = vmatpush1.msra.mxu0 0.0
      %351 = vmatprep.subr.mxu0 0.0
      %352 = vmatpush1.msra.mxu0 0.0
      %353 = vmatprep.subr.mxu0 0.0
      %354 = vmatpush1.msra.mxu0 0.0
      %355 = vmatprep.subr.mxu0 0.0
      %356 = vmatpush1.msra.mxu0 0.0
      %357 = vmatprep.subr.mxu0 0.0
      %358 = vmatpush1.msra.mxu0 0.0
      %359 = vmatprep.subr.mxu0 0.0
      %360 = vmatpush1.msra.mxu0 0.0
      %361 = vmatprep.subr.mxu0 0.0
      %362 = vmatpush1.msra.mxu0 0.0
      %363 = vmatprep.subr.mxu0 0.0
      %364 = vmatpush1.msra.mxu0 0.0
      %365 = vmatprep.subr.mxu0 0.0
      %366 = vmatpush1.msra.mxu0 0.0
      %367 = vmatprep.subr.mxu0 0.0
      %368 = vmatpush1.msra.mxu0 0.0
      %369 = vmatprep.subr.mxu0 0.0
      %370 = vmatpush1.msra.mxu0 0.0
      %371 = vmatprep.subr.mxu0 0.0
      %372 = vmatpush1.msra.mxu0 0.0
      %373 = vmatprep.subr.mxu0 0.0
      %374 = vmatpush1.msra.mxu0 0.0
      %375 = vmatprep.subr.mxu0 0.0
      %376 = vmatpush1.msra.mxu0 0.0
      %377 = vmatprep.subr.mxu0 0.0
      %378 = vmatpush1.msra.mxu0 0.0
      %379 = vmatprep.subr.mxu0 0.0
      %380 = vmatpush1.msra.mxu0 0.0
      %381 = vmatprep.subr.mxu0 0.0
      %382 = vmatpush1.msra.mxu0 0.0
      %383 = vmatprep.subr.mxu0 0.0
      %384 = vmatpush1.msra.mxu0 0.0
      %385 = vmatprep.subr.mxu0 0.0
      %386 = vmatpush1.msra.mxu0 0.0
      %387 = vmatprep.subr.mxu0 0.0
      %388 = vmatpush1.msra.mxu0 0.0
      %389 = vmatprep.subr.mxu0 0.0
      %390 = vmatpush1.msra.mxu0 0.0
      %391 = vmatprep.subr.mxu0 0.0
      %392 = vmatpush1.msra.mxu0 0.0
      %393 = vmatprep.subr.mxu0 0.0
      %394 = vmatpush1.msra.mxu0 0.0
      %395 = vmatprep.subr.mxu0 0.0
      %396 = vmatpush1.msra.mxu0 0.0
      %397 = vmatprep.subr.mxu0 0.0
      %398 = vmatpush1.msra.mxu0 0.0
      %399 = vmatprep.mubr.f32.mxu0 0.0
      %400 = vmatmul.mubr.f32.gmra.mrb[0].mxu0 %v333
      %v401 = vpop.f32.mrb[0].mxu0
      %v402 = vadd.f32 %v329, %v401
      %v403 = vpop.f32.mrb[0].mxu0
      %404 = vdwg.mxu0
      %s405 = scalar_lea.vmem %s0, 16
      %v406 = vld [vmem:[%s405] sm:$0xff]
      %407 = vrot.lane.b32.xlu0 %v244, 96
      %v408 = vpop.permute.xlu0 %407
      %409 = vrot.lane.b32.xlu0 %v245, 96
      %v410 = vpop.permute.xlu0 %409
      %vm411 = vcmask 785408
      %v412 = vsel %vm411, %v408, %v410
      %v415 = vsel %vm258, %v406, 0
      %417 = vmatprep.subr.mxu0 0.0
      %418 = vmatpush1.msra.mxu0 %v412
      %419 = vmatprep.subr.mxu0 0.0
      %420 = vmatpush1.msra.mxu0 0.0
      %421 = vmatprep.subr.mxu0 0.0
      %422 = vmatpush1.msra.mxu0 0.0
      %423 = vmatprep.subr.mxu0 0.0
      %424 = vmatpush1.msra.mxu0 0.0
      %425 = vmatprep.subr.mxu0 0.0
      %426 = vmatpush1.msra.mxu0 0.0
      %427 = vmatprep.subr.mxu0 0.0
      %428 = vmatpush1.msra.mxu0 0.0
      %429 = vmatprep.subr.mxu0 0.0
      %430 = vmatpush1.msra.mxu0 0.0
      %431 = vmatprep.subr.mxu0 0.0
      %432 = vmatpush1.msra.mxu0 0.0
      %433 = vmatprep.subr.mxu0 0.0
      %434 = vmatpush1.msra.mxu0 0.0
      %435 = vmatprep.subr.mxu0 0.0
      %436 = vmatpush1.msra.mxu0 0.0
      %437 = vmatprep.subr.mxu0 0.0
      %438 = vmatpush1.msra.mxu0 0.0
      %439 = vmatprep.subr.mxu0 0.0
      %440 = vmatpush1.msra.mxu0 0.0
      %441 = vmatprep.subr.mxu0 0.0
      %442 = vmatpush1.msra.mxu0 0.0
      %443 = vmatprep.subr.mxu0 0.0
      %444 = vmatpush1.msra.mxu0 0.0
      %445 = vmatprep.subr.mxu0 0.0
      %446 = vmatpush1.msra.mxu0 0.0
      %447 = vmatprep.subr.mxu0 0.0
      %448 = vmatpush1.msra.mxu0 0.0
      %449 = vmatprep.subr.mxu0 0.0
      %450 = vmatpush1.msra.mxu0 0.0
      %451 = vmatprep.subr.mxu0 0.0
      %452 = vmatpush1.msra.mxu0 0.0
      %453 = vmatprep.subr.mxu0 0.0
      %454 = vmatpush1.msra.mxu0 0.0
      %455 = vmatprep.subr.mxu0 0.0
      %456 = vmatpush1.msra.mxu0 0.0
      %457 = vmatprep.subr.mxu0 0.0
      %458 = vmatpush1.msra.mxu0 0.0
      %459 = vmatprep.subr.mxu0 0.0
      %460 = vmatpush1.msra.mxu0 0.0
      %461 = vmatprep.subr.mxu0 0.0
      %462 = vmatpush1.msra.mxu0 0.0
      %463 = vmatprep.subr.mxu0 0.0
      %464 = vmatpush1.msra.mxu0 0.0
      %465 = vmatprep.subr.mxu0 0.0
      %466 = vmatpush1.msra.mxu0 0.0
      %467 = vmatprep.subr.mxu0 0.0
      %468 = vmatpush1.msra.mxu0 0.0
      %469 = vmatprep.subr.mxu0 0.0
      %470 = vmatpush1.msra.mxu0 0.0
      %471 = vmatprep.subr.mxu0 0.0
      %472 = vmatpush1.msra.mxu0 0.0
      %473 = vmatprep.subr.mxu0 0.0
      %474 = vmatpush1.msra.mxu0 0.0
      %475 = vmatprep.subr.mxu0 0.0
      %476 = vmatpush1.msra.mxu0 0.0
      %477 = vmatprep.subr.mxu0 0.0
      %478 = vmatpush1.msra.mxu0 0.0
      %479 = vmatprep.subr.mxu0 0.0
      %480 = vmatpush1.msra.mxu0 0.0
      %481 = vmatprep.mubr.f32.mxu0 0.0
      %482 = vmatmul.mubr.f32.gmra.mrb[0].mxu0 %v415
      %v483 = vpop.f32.mrb[0].mxu0
      %v484 = vadd.f32 0.0, %v483
      %v485 = vpop.f32.mrb[0].mxu0
      %486 = vdwg.mxu0
      %v487 = vadd.f32 %v402, %v484
      %v488 = vpack.c.bf16 %v487, %v487
      %v489 = vld [vmem:[%s2] sm:$0xff]
      %v490 = vld [vmem:[%s2 + $0x8] sm:$0xff]
      %v491 = vld [vmem:[%s2 + $0x10] sm:$0xff]
      %v492 = vld [vmem:[%s2 + $0x18] sm:$0xff]
      %v493 = vld [vmem:[%s2 + $0x20] sm:$0xff]
      %v494 = vld [vmem:[%s2 + $0x28] sm:$0xff]
      %v495 = vld [vmem:[%s2 + $0x30] sm:$0xff]
      %v496 = vld [vmem:[%s2 + $0x38] sm:$0xff]
      %v497 = vld [vmem:[%s2 + $0x40] sm:$0xff]
      %v498 = vld [vmem:[%s2 + $0x48] sm:$0xff]
      %v499 = vld [vmem:[%s2 + $0x50] sm:$0xff]
      %v500 = vld [vmem:[%s2 + $0x58] sm:$0xff]
      %v501 = vld [vmem:[%s2 + $0x60] sm:$0xff]
      %v502 = vld [vmem:[%s2 + $0x68] sm:$0xff]
      %v503 = vld [vmem:[%s2 + $0x70] sm:$0xff]
      %v504 = vld [vmem:[%s2 + $0x78] sm:$0xff]
      %v505 = vld [vmem:[%s2 + $0x80] sm:$0xff]
      %v506 = vld [vmem:[%s2 + $0x88] sm:$0xff]
      %v507 = vld [vmem:[%s2 + $0x90] sm:$0xff]
      %v508 = vld [vmem:[%s2 + $0x98] sm:$0xff]
      %v509 = vld [vmem:[%s2 + $0xa0] sm:$0xff]
      %v510 = vld [vmem:[%s2 + $0xa8] sm:$0xff]
      %v511 = vld [vmem:[%s2 + $0xb0] sm:$0xff]
      %v512 = vld [vmem:[%s2 + $0xb8] sm:$0xff]
      %v513 = vld [vmem:[%s2 + $0xc0] sm:$0xff]
      %v514 = vld [vmem:[%s2 + $0xc8] sm:$0xff]
      %v515 = vld [vmem:[%s2 + $0xd0] sm:$0xff]
      %v516 = vld [vmem:[%s2 + $0xd8] sm:$0xff]
      %v517 = vld [vmem:[%s2 + $0xe0] sm:$0xff]
      %v518 = vld [vmem:[%s2 + $0xe8] sm:$0xff]
      %v519 = vld [vmem:[%s2 + $0xf0] sm:$0xff]
      %v520 = vld [vmem:[%s2 + $0xf8] sm:$0xff]
      %v521 = vld [vmem:[%s2 + $0x100] sm:$0xff]
      %v522 = vld [vmem:[%s2 + $0x108] sm:$0xff]
      %v523 = vld [vmem:[%s2 + $0x110] sm:$0xff]
      %v524 = vld [vmem:[%s2 + $0x118] sm:$0xff]
      %v525 = vld [vmem:[%s2 + $0x120] sm:$0xff]
      %v526 = vld [vmem:[%s2 + $0x128] sm:$0xff]
      %v527 = vld [vmem:[%s2 + $0x130] sm:$0xff]
      %v528 = vld [vmem:[%s2 + $0x138] sm:$0xff]
      %v529 = vld [vmem:[%s2 + $0x140] sm:$0xff]
      %v530 = vld [vmem:[%s2 + $0x148] sm:$0xff]
      %v531 = vld [vmem:[%s2 + $0x150] sm:$0xff]
      %v532 = vld [vmem:[%s2 + $0x158] sm:$0xff]
      %v533 = vld [vmem:[%s2 + $0x160] sm:$0xff]
      %v534 = vld [vmem:[%s2 + $0x168] sm:$0xff]
      %v535 = vld [vmem:[%s2 + $0x170] sm:$0xff]
      %v536 = vld [vmem:[%s2 + $0x178] sm:$0xff]
      %v537 = vld [vmem:[%s229] sm:$0xff]
      %v538 = vld [vmem:[%s229 + $0x8] sm:$0xff]
      %v539 = vld [vmem:[%s229 + $0x10] sm:$0xff]
      %v540 = vld [vmem:[%s229 + $0x18] sm:$0xff]
      %v541 = vld [vmem:[%s229 + $0x20] sm:$0xff]
      %v542 = vld [vmem:[%s229 + $0x28] sm:$0xff]
      %v591 = vunpack.c.l.b16 %v489
      %v592 = vunpack.c.h.b16 %v489
      %v593 = vunpack.c.l.b16 %v490
      %v594 = vunpack.c.h.b16 %v490
      %v595 = vunpack.c.l.b16 %v491
      %v596 = vunpack.c.h.b16 %v491
      %v597 = vunpack.c.l.b16 %v492
      %v598 = vunpack.c.h.b16 %v492
      %v599 = vunpack.c.l.b16 %v493
      %v600 = vunpack.c.h.b16 %v493
      %v601 = vunpack.c.l.b16 %v494
      %v602 = vunpack.c.h.b16 %v494
      %v603 = vunpack.c.l.b16 %v495
      %v604 = vunpack.c.h.b16 %v495
      %v605 = vunpack.c.l.b16 %v496
      %v606 = vunpack.c.h.b16 %v496
      %v607 = vunpack.c.l.b16 %v497
      %v608 = vunpack.c.h.b16 %v497
      %v609 = vunpack.c.l.b16 %v498
      %v610 = vunpack.c.h.b16 %v498
      %v611 = vunpack.c.l.b16 %v499
      %v612 = vunpack.c.h.b16 %v499
      %v613 = vunpack.c.l.b16 %v500
      %v614 = vunpack.c.h.b16 %v500
      %v615 = vunpack.c.l.b16 %v501
      %v616 = vunpack.c.h.b16 %v501
      %v617 = vunpack.c.l.b16 %v502
      %v618 = vunpack.c.h.b16 %v502
      %v619 = vunpack.c.l.b16 %v503
      %v620 = vunpack.c.h.b16 %v503
      %v621 = vunpack.c.l.b16 %v504
      %v622 = vunpack.c.h.b16 %v504
      %v623 = vunpack.c.l.b16 %v505
      %v624 = vunpack.c.h.b16 %v505
      %v625 = vunpack.c.l.b16 %v506
      %v626 = vunpack.c.h.b16 %v506
      %v627 = vunpack.c.l.b16 %v507
      %v628 = vunpack.c.h.b16 %v507
      %v629 = vunpack.c.l.b16 %v508
      %v630 = vunpack.c.h.b16 %v508
      %v631 = vunpack.c.l.b16 %v509
      %v632 = vunpack.c.h.b16 %v509
      %v633 = vunpack.c.l.b16 %v510
      %v634 = vunpack.c.h.b16 %v510
      %v635 = vunpack.c.l.b16 %v511
      %v636 = vunpack.c.h.b16 %v511
      %v637 = vunpack.c.l.b16 %v512
      %v638 = vunpack.c.h.b16 %v512
      %v639 = vunpack.c.l.b16 %v513
      %v640 = vunpack.c.h.b16 %v513
      %v641 = vunpack.c.l.b16 %v514
      %v642 = vunpack.c.h.b16 %v514
      %v643 = vunpack.c.l.b16 %v515
      %v644 = vunpack.c.h.b16 %v515
      %v645 = vunpack.c.l.b16 %v516
      %v646 = vunpack.c.h.b16 %v516
      %v647 = vunpack.c.l.b16 %v517
      %v648 = vunpack.c.h.b16 %v517
      %v649 = vunpack.c.l.b16 %v518
      %v650 = vunpack.c.h.b16 %v518
      %v651 = vunpack.c.l.b16 %v519
      %v652 = vunpack.c.h.b16 %v519
      %v653 = vunpack.c.l.b16 %v520
      %v654 = vunpack.c.h.b16 %v520
      %v655 = vunpack.c.l.b16 %v521
      %v656 = vunpack.c.h.b16 %v521
      %v657 = vunpack.c.l.b16 %v522
      %v658 = vunpack.c.h.b16 %v522
      %v659 = vunpack.c.l.b16 %v523
      %v660 = vunpack.c.h.b16 %v523
      %v661 = vunpack.c.l.b16 %v524
      %v662 = vunpack.c.h.b16 %v524
      %v663 = vunpack.c.l.b16 %v525
      %v664 = vunpack.c.h.b16 %v525
      %v665 = vunpack.c.l.b16 %v526
      %v666 = vunpack.c.h.b16 %v526
      %v667 = vunpack.c.l.b16 %v527
      %v668 = vunpack.c.h.b16 %v527
      %v669 = vunpack.c.l.b16 %v528
      %v670 = vunpack.c.h.b16 %v528
      %v671 = vunpack.c.l.b16 %v529
      %v672 = vunpack.c.h.b16 %v529
      %v673 = vunpack.c.l.b16 %v530
      %v674 = vunpack.c.h.b16 %v530
      %v675 = vunpack.c.l.b16 %v531
      %v676 = vunpack.c.h.b16 %v531
      %v677 = vunpack.c.l.b16 %v532
      %v678 = vunpack.c.h.b16 %v532
      %v679 = vunpack.c.l.b16 %v533
      %v680 = vunpack.c.h.b16 %v533
      %v681 = vunpack.c.l.b16 %v534
      %v682 = vunpack.c.h.b16 %v534
      %v683 = vunpack.c.l.b16 %v535
      %v684 = vunpack.c.h.b16 %v535
      %v685 = vunpack.c.l.b16 %v536
      %v686 = vunpack.c.h.b16 %v536
      %v687 = vpack.c.b16 %v597, %v591
      %v688 = vpack.c.b16 %v598, %v592
      %v689 = vpack.c.b16 %v599, %v593
      %v690 = vpack.c.b16 %v600, %v594
      %v691 = vpack.c.b16 %v601, %v595
      %v692 = vpack.c.b16 %v602, %v596
      %v693 = vpack.c.b16 %v609, %v603
      %v694 = vpack.c.b16 %v610, %v604
      %v695 = vpack.c.b16 %v611, %v605
      %v696 = vpack.c.b16 %v612, %v606
      %v697 = vpack.c.b16 %v613, %v607
      %v698 = vpack.c.b16 %v614, %v608
      %v699 = vpack.c.b16 %v621, %v615
      %v700 = vpack.c.b16 %v622, %v616
      %v701 = vpack.c.b16 %v623, %v617
      %v702 = vpack.c.b16 %v624, %v618
      %v703 = vpack.c.b16 %v625, %v619
      %v704 = vpack.c.b16 %v626, %v620
      %v705 = vpack.c.b16 %v633, %v627
      %v706 = vpack.c.b16 %v634, %v628
      %v707 = vpack.c.b16 %v635, %v629
      %v708 = vpack.c.b16 %v636, %v630
      %v709 = vpack.c.b16 %v637, %v631
      %v710 = vpack.c.b16 %v638, %v632
      %v711 = vpack.c.b16 %v645, %v639
      %v712 = vpack.c.b16 %v646, %v640
      %v713 = vpack.c.b16 %v647, %v641
      %v714 = vpack.c.b16 %v648, %v642
      %v715 = vpack.c.b16 %v649, %v643
      %v716 = vpack.c.b16 %v650, %v644
      %v717 = vpack.c.b16 %v657, %v651
      %v718 = vpack.c.b16 %v658, %v652
      %v719 = vpack.c.b16 %v659, %v653
      %v720 = vpack.c.b16 %v660, %v654
      %v721 = vpack.c.b16 %v661, %v655
      %v722 = vpack.c.b16 %v662, %v656
      %v723 = vpack.c.b16 %v669, %v663
      %v724 = vpack.c.b16 %v670, %v664
      %v725 = vpack.c.b16 %v671, %v665
      %v726 = vpack.c.b16 %v672, %v666
      %v727 = vpack.c.b16 %v673, %v667
      %v728 = vpack.c.b16 %v674, %v668
      %v729 = vpack.c.b16 %v681, %v675
      %v730 = vpack.c.b16 %v682, %v676
      %v731 = vpack.c.b16 %v683, %v677
      %v732 = vpack.c.b16 %v684, %v678
      %v733 = vpack.c.b16 %v685, %v679
      %v734 = vpack.c.b16 %v686, %v680
      %783 = vmatprep.subr.bf16.mxu0 %v688
      %784 = vmatpush1.bf16.msra.mxu0 %v687
      %785 = vmatprep.subr.bf16.mxu0 %v694
      %786 = vmatpush1.bf16.msra.mxu0 %v693
      %787 = vmatprep.subr.bf16.mxu0 %v700
      %788 = vmatpush1.bf16.msra.mxu0 %v699
      %789 = vmatprep.subr.bf16.mxu0 %v706
      %790 = vmatpush1.bf16.msra.mxu0 %v705
      %791 = vmatprep.subr.bf16.mxu0 %v712
      %792 = vmatpush1.bf16.msra.mxu0 %v711
      %793 = vmatprep.subr.bf16.mxu0 %v718
      %794 = vmatpush1.bf16.msra.mxu0 %v717
      %795 = vmatprep.subr.bf16.mxu0 %v724
      %796 = vmatpush1.bf16.msra.mxu0 %v723
      %797 = vmatprep.subr.bf16.mxu0 %v730
      %798 = vmatpush1.bf16.msra.mxu0 %v729
      %799 = vmatprep.subr.bf16.mxu0 0
      %800 = vmatpush1.bf16.msra.mxu0 0
      %801 = vmatprep.subr.bf16.mxu0 0
      %802 = vmatpush1.bf16.msra.mxu0 0
      %803 = vmatprep.subr.bf16.mxu0 0
      %804 = vmatpush1.bf16.msra.mxu0 0
      %805 = vmatprep.subr.bf16.mxu0 0
      %806 = vmatpush1.bf16.msra.mxu0 0
      %807 = vmatprep.subr.bf16.mxu0 0
      %808 = vmatpush1.bf16.msra.mxu0 0
      %809 = vmatprep.subr.bf16.mxu0 0
      %810 = vmatpush1.bf16.msra.mxu0 0
      %811 = vmatprep.subr.bf16.mxu0 0
      %812 = vmatpush1.bf16.msra.mxu0 0
      %813 = vmatprep.subr.bf16.mxu0 0
      %814 = vmatpush1.bf16.msra.mxu0 0
      %815 = vmatprep.mubr.bf16.mxu0 0
      %816 = vmatmul.mubr.bf16.gmra.mrb[0].mxu0 %v488
      %v817 = vpop.f32.mrb[0].mxu0
      %v818 = vadd.f32 %v537, %v817
      %v819 = vpop.f32.mrb[0].mxu0
      %v820 = vadd.f32 %v538, %v819
      %v821 = vpop.f32.mrb[0].mxu0
      %v822 = vpop.f32.mrb[0].mxu0
      %823 = vdwg.mxu0
      %824 = vmatprep.subr.bf16.mxu0 %v690
      %825 = vmatpush1.bf16.msra.mxu0 %v689
      %826 = vmatprep.subr.bf16.mxu0 %v696
      %827 = vmatpush1.bf16.msra.mxu0 %v695
      %828 = vmatprep.subr.bf16.mxu0 %v702
      %829 = vmatpush1.bf16.msra.mxu0 %v701
      %830 = vmatprep.subr.bf16.mxu0 %v708
      %831 = vmatpush1.bf16.msra.mxu0 %v707
      %832 = vmatprep.subr.bf16.mxu0 %v714
      %833 = vmatpush1.bf16.msra.mxu0 %v713
      %834 = vmatprep.subr.bf16.mxu0 %v720
      %835 = vmatpush1.bf16.msra.mxu0 %v719
      %836 = vmatprep.subr.bf16.mxu0 %v726
      %837 = vmatpush1.bf16.msra.mxu0 %v725
      %838 = vmatprep.subr.bf16.mxu0 %v732
      %839 = vmatpush1.bf16.msra.mxu0 %v731
      %840 = vmatprep.subr.bf16.mxu0 0
      %841 = vmatpush1.bf16.msra.mxu0 0
      %842 = vmatprep.subr.bf16.mxu0 0
      %843 = vmatpush1.bf16.msra.mxu0 0
      %844 = vmatprep.subr.bf16.mxu0 0
      %845 = vmatpush1.bf16.msra.mxu0 0
      %846 = vmatprep.subr.bf16.mxu0 0
      %847 = vmatpush1.bf16.msra.mxu0 0
      %848 = vmatprep.subr.bf16.mxu0 0
      %849 = vmatpush1.bf16.msra.mxu0 0
      %850 = vmatprep.subr.bf16.mxu0 0
      %851 = vmatpush1.bf16.msra.mxu0 0
      %852 = vmatprep.subr.bf16.mxu0 0
      %853 = vmatpush1.bf16.msra.mxu0 0
      %854 = vmatprep.subr.bf16.mxu0 0
      %855 = vmatpush1.bf16.msra.mxu0 0
      %856 = vmatprep.mubr.bf16.mxu0 0
      %857 = vmatmul.mubr.bf16.gmra.mrb[0].mxu0 %v488
      %v858 = vpop.f32.mrb[0].mxu0
      %v859 = vadd.f32 %v539, %v858
      %v860 = vpop.f32.mrb[0].mxu0
      %v861 = vadd.f32 %v540, %v860
      %v862 = vpop.f32.mrb[0].mxu0
      %v863 = vpop.f32.mrb[0].mxu0
      %864 = vdwg.mxu0
      %865 = vmatprep.subr.bf16.mxu0 %v692
      %866 = vmatpush1.bf16.msra.mxu0 %v691
      %867 = vmatprep.subr.bf16.mxu0 %v698
      %868 = vmatpush1.bf16.msra.mxu0 %v697
      %869 = vmatprep.subr.bf16.mxu0 %v704
      %870 = vmatpush1.bf16.msra.mxu0 %v703
      %871 = vmatprep.subr.bf16.mxu0 %v710
      %872 = vmatpush1.bf16.msra.mxu0 %v709
      %873 = vmatprep.subr.bf16.mxu0 %v716
      %874 = vmatpush1.bf16.msra.mxu0 %v715
      %875 = vmatprep.subr.bf16.mxu0 %v722
      %876 = vmatpush1.bf16.msra.mxu0 %v721
      %877 = vmatprep.subr.bf16.mxu0 %v728
      %878 = vmatpush1.bf16.msra.mxu0 %v727
      %879 = vmatprep.subr.bf16.mxu0 %v734
      %880 = vmatpush1.bf16.msra.mxu0 %v733
      %881 = vmatprep.subr.bf16.mxu0 0
      %882 = vmatpush1.bf16.msra.mxu0 0
      %883 = vmatprep.subr.bf16.mxu0 0
      %884 = vmatpush1.bf16.msra.mxu0 0
      %885 = vmatprep.subr.bf16.mxu0 0
      %886 = vmatpush1.bf16.msra.mxu0 0
      %887 = vmatprep.subr.bf16.mxu0 0
      %888 = vmatpush1.bf16.msra.mxu0 0
      %889 = vmatprep.subr.bf16.mxu0 0
      %890 = vmatpush1.bf16.msra.mxu0 0
      %891 = vmatprep.subr.bf16.mxu0 0
      %892 = vmatpush1.bf16.msra.mxu0 0
      %893 = vmatprep.subr.bf16.mxu0 0
      %894 = vmatpush1.bf16.msra.mxu0 0
      %895 = vmatprep.subr.bf16.mxu0 0
      %896 = vmatpush1.bf16.msra.mxu0 0
      %897 = vmatprep.mubr.bf16.mxu0 0
      %898 = vmatmul.mubr.bf16.gmra.mrb[0].mxu0 %v488
      %v899 = vpop.f32.mrb[0].mxu0
      %v900 = vadd.f32 %v541, %v899
      %v901 = vpop.f32.mrb[0].mxu0
      %v902 = vadd.f32 %v542, %v901
      %v903 = vpop.f32.mrb[0].mxu0
      %v904 = vpop.f32.mrb[0].mxu0
      %905 = vdwg.mxu0
      %v906 = vxor.u32 %v861, 2147483648
      %v907 = vxor.u32 %v900, 2147483648
      %v908 = vxor.u32 %v902, 2147483648
      %v909 = vmul.f32 %v906, 1.442695
      %v910 = vpow.pop %v909
      %v911 = vmul.f32 %v907, 1.442695
      %v912 = vpow.pop %v911
      %v913 = vmul.f32 %v908, 1.442695
      %v914 = vpow.pop %v913
      %v915 = vadd.f32 %v910, 1.0
      %v916 = vadd.f32 %v912, 1.0
      %v917 = vadd.f32 %v914, 1.0
      %v918 = vrcp.pop %v915
      %v919 = vmul.f32 1.0, %v918
      %v920 = vrcp.pop %v916
      %v921 = vmul.f32 1.0, %v920
      %v922 = vrcp.pop %v917
      %v923 = vmul.f32 1.0, %v922
      %v924 = vmul.f32 %v818, %v919
      %v925 = vmul.f32 %v820, %v921
      %v926 = vmul.f32 %v859, %v923
      %v927 = vmax.f32 %v924, %v925
      %v928 = vmax.f32 %v927, %v926
      %929 = vst [vmem:[%s237] sm:$0xff] %v928
      %p930 = scmp.lt.s32.totalorder %s19, 1
      %s931 = scalar_select %p930, %s19, 1
      %p932 = scmp.lt.s32.totalorder %s20, 1
      %s933 = scalar_select %p932, %s20, 1
      %s934 = smul.addr %s931, 2
      %s935 = sadd.s32 %s933, %s934
      %s936 = smul.addr %s935, 8
      %s937 = scalar_lea.vmem %s4, %s936
      // Predicated region
      $region37: #{sts_sharing_layer.1} parent=35 // pred_check
        %p938 = pneg %p141
      $region38: #{sts_sharing_layer.1} parent=35 // pred_check_branch
        %940 = sbr.rel (%p938) target = $region40
      $region39: #{sts_sharing_layer.1} parent=35 // pred_region
        _
      $region40: #{sts_sharing_layer.1} parent=35 // pred_fallthru
        _
    $region36: #{sts_sharing_layer.1} parent=5 // pred_fallthru
      _
    %p941 = scmp.le.s32.totalorder 2, %s10
    // Predicated region
    $region41: #{sts_sharing_layer.1} parent=5 // pred_check
      %p942 = pneg %p941
    $region42: #{sts_sharing_layer.1} parent=5 // pred_check_branch
      %944 = sbr.rel (%p942) target = $region44
    $region43: #{sts_sharing_layer.1} parent=5 // pred_region
      %s945 = ssub.s32 %s10, 2
      // Predicated region
      $region45: #{sts_sharing_layer.1} parent=43 // pred_check
        %p946 = pneg %p147
      $region46: #{sts_sharing_layer.1} parent=43 // pred_check_branch
        %948 = sbr.rel (%p946) target = $region48
      $region47: #{sts_sharing_layer.1} parent=43 // pred_region
        %p949 = scmp.lt.s32.totalorder %s21, 1
        %s950 = scalar_select %p949, %s21, 1
        %p951 = scmp.lt.s32.totalorder %s22, 1
        %s952 = scalar_select %p951, %s22, 1
        %s953 = smul.addr %s950, 2
        %s954 = sadd.s32 %s952, %s953
        %s955 = smul.addr %s954, 8
        %s956 = scalar_lea.vmem %s4, %s955
      $region48: #{sts_sharing_layer.1} parent=43 // pred_fallthru
        _
    $region44: #{sts_sharing_layer.1} parent=5 // pred_fallthru
      _
  $region6: #{sts_sharing_layer.1} parent=0 // loop_footer
    %s14 = sadd.s32 1, %s10
  $region7: #{sts_sharing_layer.1} parent=0 // loop_footer_branch
    %9 = sbr.rel target = $region3
  $region8: #{sts_sharing_layer.1} parent=0 // loop_exit
    _

</llo_original>
